<compile_context>
chip_gen: v7x
topology: tpu7x:2x2x1
jax: 0.10.0
libtpu: 0.0.40
codegen_flags: <defaults>
</compile_context>

<pallas_src>
import math

import jax
import jax.numpy as jnp
from jax.experimental import pallas as pl
from jax.experimental.pallas import tpu as pltpu


def build_rope_tables(channel_dims, feature_dim, base=10000):
    """One-time precompute matching torch RoPE.__init__: interleaved, sign-folded, split."""
    k_max = feature_dim // (2 * len(channel_dims))
    assert feature_dim % k_max == 0
    theta_ks = 1.0 / (base ** (jnp.arange(k_max, dtype=jnp.float32) / k_max))
    grids = jnp.meshgrid(
        *[jnp.arange(d, dtype=jnp.float32) for d in channel_dims], indexing="ij"
    )
    # angles: (*channel_dims, C//2)
    angles = jnp.concatenate([g[..., None] * theta_ks for g in grids], axis=-1)
    cos = jnp.cos(angles)
    sin = jnp.sin(angles)
    zero = jnp.zeros_like(sin)
    # cos duplicated on both pair slots; -sin only on even slots; +sin only on odd slots.
    cos_full = jnp.stack([cos, cos], axis=-1).reshape(*channel_dims, feature_dim)
    sin_even = jnp.stack([-sin, zero], axis=-1).reshape(*channel_dims, feature_dim)
    sin_odd = jnp.stack([zero, sin], axis=-1).reshape(*channel_dims, feature_dim)
    return cos_full, sin_even, sin_odd


def _plan(B, nc, c, target_block_bytes):
    """Pick (lane, rows, tile_rows, num_tiles, bt, nb) for a lane-dense (rows, lane) view."""
    if nc % 128 == 0:
        # lane=128: pair-swap rolls stay within one vreg; DMA length is set by the row
        # tiling (contiguous rows), so a narrow lane does not shorten the DMAs.
        lane = 128
    else:
        # Fallback: full channel extent (always a legal, untiled last dim).
        # TODO(synk): fold B into rows / pad to a 128-multiple to avoid masked sub-128 stores.
        lane = c
    assert lane % 2 == 0, "RoPE pair-swap requires an even lane width"
    rows = nc // lane
    per_batch_out = rows * lane * 4  # f32 output bytes per batch

    if per_batch_out <= target_block_bytes and rows % 8 == 0:
        # Whole batch fits one block: pack several batches per grid step.
        bt = min(B, max(1, target_block_bytes // per_batch_out))
        while B % bt:
            bt -= 1
        tile_rows = rows
    else:
        bt = 1
        tile_rows = rows
        budget_rows = max(8, target_block_bytes // (lane * 4))
        cand = (min(rows, budget_rows) // 8) * 8
        while cand >= 8:
            if rows % cand == 0:
                tile_rows = cand
                break
            cand -= 8

    num_tiles = rows // tile_rows
    nb = B // bt
    return lane, rows, tile_rows, num_tiles, bt, nb


def rope_kernel(cos_ref, sen_ref, sod_ref, x_ref, o_ref):
    """out = cos*x + sin_even*x[j+1] + sin_odd*x[j-1]; fully elementwise + 2 lane rolls."""
    x = x_ref[...].astype(jnp.float32)          # (bt, tr, lane), interleaved (re, im) pairs
    bt, tr, lane = x.shape
    x2 = x.reshape(bt * tr, lane)
    # Pair-swap neighbours along the lane axis; wrapped values are multiplied by 0 below.
    nxt = pltpu.roll(x2, shift=lane - 1, axis=1).reshape(bt, tr, lane)  # x[j+1] at j
    prv = pltpu.roll(x2, shift=1, axis=1).reshape(bt, tr, lane)         # x[j-1] at j
    # Tables are (tr, lane); broadcast over the packed-batch dim.
    o_ref[...] = cos_ref[...] * x + sen_ref[...] * nxt + sod_ref[...] * prv


def rope_forward(x, cos_full, sin_even, sin_odd, *,
                 target_block_bytes=2 * 1024 * 1024, donate_x=False):
    """x: (B, *spatial, C) -> same shape, float32 (matches the torch module)."""
    orig_shape = x.shape
    if not (x.dtype == jnp.float32 or x.dtype == jnp.bfloat16):
        x = x.astype(jnp.float32)
    B, C = x.shape[0], x.shape[-1]
    nc = math.prod(x.shape[1:])  # per-batch element count = H*W*C
    assert cos_full.size == nc and sin_even.size == nc and sin_odd.size == nc

    lane, rows, tile_rows, num_tiles, bt, nb = _plan(B, nc, C, target_block_bytes)

    x3 = x.reshape(B, rows, lane)
    cos2 = cos_full.astype(jnp.float32).reshape(rows, lane)
    sen2 = sin_even.astype(jnp.float32).reshape(rows, lane)
    sod2 = sin_odd.astype(jnp.float32).reshape(rows, lane)

    # VMEM budget: 2x buffers for x/out blocks + 2x for the three table tiles + slack.
    x_blk = bt * tile_rows * lane * x.dtype.itemsize
    o_blk = bt * tile_rows * lane * 4
    t_blk = 3 * tile_rows * lane * 4
    est = 2 * (x_blk + o_blk + t_blk) + (2 << 20)
    vmem_limit = int(min(32 * 1024 * 1024, max(est, 16 * 1024 * 1024)))

    io_aliases = {}
    if donate_x and x.dtype == jnp.float32:
        io_aliases = {3: 0}  # alias x -> out (in-place RoPE) when the caller donates x

    out = pl.pallas_call(
        rope_kernel,
        out_shape=jax.ShapeDtypeStruct((B, rows, lane), jnp.float32),
        grid=(num_tiles, nb),
        in_specs=[
            # Tables: block index constant along the (inner, fastest) batch axis ->
            # Pallas skips re-DMA between batch steps; each byte fetched once per core.
            pl.BlockSpec((tile_rows, lane), lambda i, b: (i, 0)),
            pl.BlockSpec((tile_rows, lane), lambda i, b: (i, 0)),
            pl.BlockSpec((tile_rows, lane), lambda i, b: (i, 0)),
            pl.BlockSpec((bt, tile_rows, lane), lambda i, b: (b, i, 0)),
        ],
        out_specs=pl.BlockSpec((bt, tile_rows, lane), lambda i, b: (b, i, 0)),
        compiler_params=pltpu.CompilerParams(
            dimension_semantics=("parallel", "parallel"),
            vmem_limit_bytes=vmem_limit,
        ),
        input_output_aliases=io_aliases,
    )(cos2, sen2, sod2, x3)

    return out.reshape(orig_shape)


def rope_reference(x, base=10000):
    """Pure-JAX reference mirroring the torch complex-view forward (independent path)."""
    x = x.astype(jnp.float32)
    B, H, W, C = x.shape
    k_max = C // 4
    theta = 1.0 / (base ** (jnp.arange(k_max, dtype=jnp.float32) / k_max))
    gh, gw = jnp.meshgrid(
        jnp.arange(H, dtype=jnp.float32), jnp.arange(W, dtype=jnp.float32), indexing="ij"
    )
    angles = jnp.concatenate([gh[..., None] * theta, gw[..., None] * theta], axis=-1)
    cos, sin = jnp.cos(angles), jnp.sin(angles)
    xp = x.reshape(B, H, W, C // 2, 2)
    xr, xi = xp[..., 0], xp[..., 1]
    out = jnp.stack([cos * xr - sin * xi, sin * xr + cos * xi], axis=-1)
    return out.reshape(B, H, W, C)


if __name__ == "__main__":
    B, H, W, C = 2, 16, 16, 32  # RoPE(shape=(H, W, C)) applied to x of shape (B, H, W, C)

    cos_full, sin_even, sin_odd = build_rope_tables((H, W), C, base=10000)

    key = jax.random.PRNGKey(0)
    x = jax.random.normal(key, (B, H, W, C), dtype=jnp.float32)

    # float32 path
    out = jax.block_until_ready(rope_forward(x, cos_full, sin_even, sin_odd))
    ref = rope_reference(x)
    assert out.shape == (B, H, W, C)
    assert out.dtype == jnp.float32
    assert jnp.allclose(out, ref, atol=1e-5, rtol=1e-5), float(jnp.max(jnp.abs(out - ref)))

    # bfloat16 path: streamed as bf16, cast to f32 inside the kernel (no wrapper cast pass)
    xb = x.astype(jnp.bfloat16)
    out_b = jax.block_until_ready(rope_forward(xb, cos_full, sin_even, sin_odd))
    ref_b = rope_reference(xb.astype(jnp.float32))
    assert out_b.dtype == jnp.float32
    assert jnp.allclose(out_b, ref_b, atol=1e-4, rtol=1e-4), float(jnp.max(jnp.abs(out_b - ref_b)))

    print("KERNEL_OK")
</pallas_src>

<mosaic_0001>
module attributes {stable_mosaic.version = 11 : i64} {
  func.func @rope_kernel(%arg0: i32, %arg1: i32, %arg2: memref<64x128xf32, #tpu.memory_space<vmem>>, %arg3: memref<64x128xf32, #tpu.memory_space<vmem>>, %arg4: memref<64x128xf32, #tpu.memory_space<vmem>>, %arg5: memref<2x64x128xf32, #tpu.memory_space<vmem>>, %arg6: memref<2x64x128xf32, #tpu.memory_space<vmem>>) attributes {dimension_semantics = [#tpu.dimension_semantics<parallel>, #tpu.dimension_semantics<parallel>], iteration_bounds = array<i64: 1, 1>, scalar_prefetch = 0 : i64, scratch_operands = 0 : i64, tpu.core_type = #tpu.core_type<tc>, window_params = [{transform_indices = @transform_0, window_bounds = array<i64: 64, 128>}, {transform_indices = @transform_1, window_bounds = array<i64: 64, 128>}, {transform_indices = @transform_2, window_bounds = array<i64: 64, 128>}, {transform_indices = @transform_3, window_bounds = array<i64: 2, 64, 128>}, {transform_indices = @transform_4, window_bounds = array<i64: 2, 64, 128>}]} {
    %c0 = arith.constant 0 : index
    %c0_0 = arith.constant 0 : index
    %c0_1 = arith.constant 0 : index
    %0 = vector.load %arg5[%c0, %c0_0, %c0_1] : memref<2x64x128xf32, #tpu.memory_space<vmem>>, vector<2x64x128xf32>
    %1 = vector.shape_cast %0 : vector<2x64x128xf32> to vector<128x128xf32>
    %c127_i32 = arith.constant 127 : i32
    %2 = tpu.dynamic_rotate %1 by %c127_i32 dim 1 : vector<128x128xf32>, i32 -> vector<128x128xf32>
    %3 = vector.shape_cast %2 : vector<128x128xf32> to vector<2x64x128xf32>
    %c1_i32 = arith.constant 1 : i32
    %4 = tpu.dynamic_rotate %1 by %c1_i32 dim 1 : vector<128x128xf32>, i32 -> vector<128x128xf32>
    %5 = vector.shape_cast %4 : vector<128x128xf32> to vector<2x64x128xf32>
    %c0_2 = arith.constant 0 : index
    %c0_3 = arith.constant 0 : index
    %6 = vector.load %arg2[%c0_2, %c0_3] : memref<64x128xf32, #tpu.memory_space<vmem>>, vector<64x128xf32>
    %7 = vector.shape_cast %6 : vector<64x128xf32> to vector<1x64x128xf32>
    %8 = vector.broadcast %7 : vector<1x64x128xf32> to vector<2x64x128xf32>
    %9 = arith.mulf %8, %0 : vector<2x64x128xf32>
    %c0_4 = arith.constant 0 : index
    %c0_5 = arith.constant 0 : index
    %10 = vector.load %arg3[%c0_4, %c0_5] : memref<64x128xf32, #tpu.memory_space<vmem>>, vector<64x128xf32>
    %11 = vector.shape_cast %10 : vector<64x128xf32> to vector<1x64x128xf32>
    %12 = vector.broadcast %11 : vector<1x64x128xf32> to vector<2x64x128xf32>
    %13 = arith.mulf %12, %3 : vector<2x64x128xf32>
    %14 = arith.addf %9, %13 : vector<2x64x128xf32>
    %c0_6 = arith.constant 0 : index
    %c0_7 = arith.constant 0 : index
    %15 = vector.load %arg4[%c0_6, %c0_7] : memref<64x128xf32, #tpu.memory_space<vmem>>, vector<64x128xf32>
    %16 = vector.shape_cast %15 : vector<64x128xf32> to vector<1x64x128xf32>
    %17 = vector.broadcast %16 : vector<1x64x128xf32> to vector<2x64x128xf32>
    %18 = arith.mulf %17, %5 : vector<2x64x128xf32>
    %19 = arith.addf %14, %18 : vector<2x64x128xf32>
    %c0_8 = arith.constant 0 : index
    %c0_9 = arith.constant 0 : index
    %c0_10 = arith.constant 0 : index
    %20 = vector.load %arg6[%c0_8, %c0_9, %c0_10] : memref<2x64x128xf32, #tpu.memory_space<vmem>>, vector<2x64x128xf32>
    tpu.vector_store %arg6[%c0_8, %c0_9, %c0_10], %19 {strides = array<i32>} : memref<2x64x128xf32, #tpu.memory_space<vmem>>, vector<2x64x128xf32>,
    return
  }
  func.func @transform_0(%arg0: i32, %arg1: i32) -> (i32, i32) {
    %c0_i32 = arith.constant 0 : i32
    %c0_i32_0 = arith.constant 0 : i32
    return %arg0, %c0_i32 : i32, i32
  }
  func.func @transform_1(%arg0: i32, %arg1: i32) -> (i32, i32) {
    %c0_i32 = arith.constant 0 : i32
    %c0_i32_0 = arith.constant 0 : i32
    return %arg0, %c0_i32 : i32, i32
  }
  func.func @transform_2(%arg0: i32, %arg1: i32) -> (i32, i32) {
    %c0_i32 = arith.constant 0 : i32
    %c0_i32_0 = arith.constant 0 : i32
    return %arg0, %c0_i32 : i32, i32
  }
  func.func @transform_3(%arg0: i32, %arg1: i32) -> (i32, i32, i32) {
    %c0_i32 = arith.constant 0 : i32
    %c0_i32_0 = arith.constant 0 : i32
    return %arg1, %arg0, %c0_i32 : i32, i32, i32
  }
  func.func @transform_4(%arg0: i32, %arg1: i32) -> (i32, i32, i32) {
    %c0_i32 = arith.constant 0 : i32
    %c0_i32_0 = arith.constant 0 : i32
    return %arg1, %arg0, %c0_i32 : i32, i32, i32
  }
}

</mosaic_0001>

<llo_original>
// kernel: tpu_custom_call.1
$region0: #{tpu_custom_call.1}
  #allocation0 [shape = 'u32[]', space=smem, size = 0x4, offset = 0x4, fixed_abs, tag = 'smem constant byte address 0x4 - core index']
  #allocation1 [shape = 'u32[144,128]{1,0:T(1,128)}', space=vmem, size = 0x12000, scoped, tag = 'internal scratch']
  %s0 = inlined_call_operand.hbm [shape: f32[64,128], index: 0, kind: input, shape index: {}]
  %s1 = inlined_call_operand.hbm [shape: f32[64,128], index: 1, kind: input, shape index: {}]
  %s2 = inlined_call_operand.hbm [shape: f32[64,128], index: 2, kind: input, shape index: {}]
  %s3 = inlined_call_operand.hbm [shape: f32[2,64,128], index: 3, kind: input, shape index: {}]
  %s4 = inlined_call_operand.hbm [shape: f32[2,64,128], index: 4, kind: output, shape index: {}]
  %s5 = sld [smem:[#allocation0]]
  $region42: #{tpu_custom_call.1} parent=0
    _
  %s7 = ssub.s32 1, %s5
  %s8 = scalar_select 0, %s7, %s5
  $region1: #{tpu_custom_call.1} parent=0
    #allocation2 [shape = 'u8[32768]{0}', space=vmem, size = 0x8000, scoped, tag = 'input window, operand 0, single buffered']
    #allocation3 [shape = 's32[1]{0}', space=sflag, size = 0x4, scoped, tag = 'scoped memory for tpu_custom_call.1']
    #allocation4 [shape = 's32[1]{0}', space=sflag, size = 0x4, scoped, tag = 'scoped memory for tpu_custom_call.1']
    #allocation5 [shape = 'u8[32768]{0}', space=vmem, size = 0x8000, scoped, tag = 'input window, operand 1, single buffered']
    #allocation6 [shape = 's32[1]{0}', space=sflag, size = 0x4, scoped, tag = 'scoped memory for tpu_custom_call.1']
    #allocation7 [shape = 'u8[32768]{0}', space=vmem, size = 0x8000, scoped, tag = 'input window, operand 2, single buffered']
    #allocation8 [shape = 'u8[65536]{0}', space=vmem, size = 0x10000, scoped, tag = 'input window, operand 3, single buffered']
    #allocation9 [shape = 's32[1]{0}', space=sflag, size = 0x4, scoped, tag = 'scoped memory for tpu_custom_call.1']
    #allocation10 [shape = 'u8[65536]{0}', space=vmem, size = 0x10000, scoped, tag = 'output window, operand 0, single buffered']
    %9 = vsyncpa [#allocation3], 0
    %10 = vsyncpa [#allocation6], 0
    %11 = vsyncpa [#allocation9], 0
    %12 = vsyncpa [#allocation4], 0
    // Predicated region
    $region2: #{tpu_custom_call.1} parent=1 // pred_check
      _
    $region3: #{tpu_custom_call.1} parent=1 // pred_check_branch
      %14 = sbr.rel (0) target = $region5
    $region4: #{tpu_custom_call.1} parent=1 // pred_region
      %s16 = ssub.s32 1024, 1024
      %17 = vsyncadd [#allocation3], %s16
      %s18 = sshll.u32 [#allocation2], 4
      %s19 = int_to_ptr.vmem [resolvable:$true] %s18
      %24 = dma.hbm_to_vmem [thread:$0]  %s0, 1024, %s19, [#allocation3], 128, 128, 8
    $region5: #{tpu_custom_call.1} parent=1 // pred_fallthru
      _
    // Predicated region
    $region6: #{tpu_custom_call.1} parent=1 // pred_check
      _
    $region7: #{tpu_custom_call.1} parent=1 // pred_check_branch
      %26 = sbr.rel (0) target = $region9
    $region8: #{tpu_custom_call.1} parent=1 // pred_region
      %s28 = ssub.s32 1024, 1024
      %29 = vsyncadd [#allocation6], %s28
      %s30 = sshll.u32 [#allocation5], 4
      %s31 = int_to_ptr.vmem [resolvable:$true] %s30
      %36 = dma.hbm_to_vmem [thread:$0]  %s1, 1024, %s31, [#allocation6], 128, 128, 8
    $region9: #{tpu_custom_call.1} parent=1 // pred_fallthru
      _
    // Predicated region
    $region10: #{tpu_custom_call.1} parent=1 // pred_check
      _
    $region11: #{tpu_custom_call.1} parent=1 // pred_check_branch
      %38 = sbr.rel (0) target = $region13
    $region12: #{tpu_custom_call.1} parent=1 // pred_region
      %s40 = ssub.s32 1024, 1024
      %41 = vsyncadd [#allocation6], %s40
      %s42 = sshll.u32 [#allocation7], 4
      %s43 = int_to_ptr.vmem [resolvable:$true] %s42
      %48 = dma.hbm_to_vmem [thread:$0]  %s2, 1024, %s43, [#allocation6], 128, 128, 8
    $region13: #{tpu_custom_call.1} parent=1 // pred_fallthru
      _
    // Predicated region
    $region14: #{tpu_custom_call.1} parent=1 // pred_check
      _
    $region15: #{tpu_custom_call.1} parent=1 // pred_check_branch
      %50 = sbr.rel (0) target = $region17
    $region16: #{tpu_custom_call.1} parent=1 // pred_region
      %s52 = ssub.s32 2048, 2048
      %53 = vsyncadd [#allocation9], %s52
      %s54 = sshll.u32 [#allocation8], 4
      %s55 = int_to_ptr.vmem [resolvable:$true] %s54
      %60 = dma.hbm_to_vmem [thread:$0]  %s3, 2048, %s55, [#allocation9], 128, 128, 8
    $region17: #{tpu_custom_call.1} parent=1 // pred_fallthru
      _
    // Predicated region
    $region18: #{tpu_custom_call.1} parent=1 // pred_check
      _
    $region19: #{tpu_custom_call.1} parent=1 // pred_check_branch
      %62 = sbr.rel (0) target = $region21
    $region20: #{tpu_custom_call.1} parent=1 // pred_region
      %63 = dma.done [#allocation3], 1024
    $region21: #{tpu_custom_call.1} parent=1 // pred_fallthru
      _
    // Predicated region
    $region22: #{tpu_custom_call.1} parent=1 // pred_check
      _
    $region23: #{tpu_custom_call.1} parent=1 // pred_check_branch
      %65 = sbr.rel (0) target = $region25
    $region24: #{tpu_custom_call.1} parent=1 // pred_region
      %66 = dma.done [#allocation6], 1024
    $region25: #{tpu_custom_call.1} parent=1 // pred_fallthru
      _
    // Predicated region
    $region26: #{tpu_custom_call.1} parent=1 // pred_check
      _
    $region27: #{tpu_custom_call.1} parent=1 // pred_check_branch
      %68 = sbr.rel (0) target = $region29
    $region28: #{tpu_custom_call.1} parent=1 // pred_region
      %69 = dma.done [#allocation6], 1024
    $region29: #{tpu_custom_call.1} parent=1 // pred_fallthru
      _
    // Predicated region
    $region30: #{tpu_custom_call.1} parent=1 // pred_check
      _
    $region31: #{tpu_custom_call.1} parent=1 // pred_check_branch
      %71 = sbr.rel (0) target = $region33
    $region32: #{tpu_custom_call.1} parent=1 // pred_region
      %72 = dma.done [#allocation9], 2048
    $region33: #{tpu_custom_call.1} parent=1 // pred_fallthru
      _
    %v73 = vld [vmem:[#allocation8] sm:$0xff]
    %v74 = vld [vmem:[#allocation8 + $0x8] sm:$0xff]
    %v75 = vld [vmem:[#allocation8 + $0x10] sm:$0xff]
    %v76 = vld [vmem:[#allocation8 + $0x18] sm:$0xff]
    %v77 = vld [vmem:[#allocation8 + $0x20] sm:$0xff]
    %v78 = vld [vmem:[#allocation8 + $0x28] sm:$0xff]
    %v79 = vld [vmem:[#allocation8 + $0x30] sm:$0xff]
    %v80 = vld [vmem:[#allocation8 + $0x38] sm:$0xff]
    %v81 = vld [vmem:[#allocation8 + $0x40] sm:$0xff]
    %v82 = vld [vmem:[#allocation8 + $0x48] sm:$0xff]
    %v83 = vld [vmem:[#allocation8 + $0x50] sm:$0xff]
    %v84 = vld [vmem:[#allocation8 + $0x58] sm:$0xff]
    %v85 = vld [vmem:[#allocation8 + $0x60] sm:$0xff]
    %v86 = vld [vmem:[#allocation8 + $0x68] sm:$0xff]
    %v87 = vld [vmem:[#allocation8 + $0x70] sm:$0xff]
    %v88 = vld [vmem:[#allocation8 + $0x78] sm:$0xff]
    %89 = vrot.lane.b32.xlu0 %v73, 127
    %v90 = vpop.permute.xlu0 %89
    %91 = vrot.lane.b32.xlu0 %v74, 127
    %v92 = vpop.permute.xlu0 %91
    %93 = vrot.lane.b32.xlu0 %v75, 127
    %v94 = vpop.permute.xlu0 %93
    %95 = vrot.lane.b32.xlu0 %v76, 127
    %v96 = vpop.permute.xlu0 %95
    %97 = vrot.lane.b32.xlu0 %v77, 127
    %v98 = vpop.permute.xlu0 %97
    %99 = vrot.lane.b32.xlu0 %v78, 127
    %v100 = vpop.permute.xlu0 %99
    %101 = vrot.lane.b32.xlu0 %v79, 127
    %v102 = vpop.permute.xlu0 %101
    %103 = vrot.lane.b32.xlu0 %v80, 127
    %v104 = vpop.permute.xlu0 %103
    %105 = vrot.lane.b32.xlu0 %v81, 127
    %v106 = vpop.permute.xlu0 %105
    %107 = vrot.lane.b32.xlu0 %v82, 127
    %v108 = vpop.permute.xlu0 %107
    %109 = vrot.lane.b32.xlu0 %v83, 127
    %v110 = vpop.permute.xlu0 %109
    %111 = vrot.lane.b32.xlu0 %v84, 127
    %v112 = vpop.permute.xlu0 %111
    %113 = vrot.lane.b32.xlu0 %v85, 127
    %v114 = vpop.permute.xlu0 %113
    %115 = vrot.lane.b32.xlu0 %v86, 127
    %v116 = vpop.permute.xlu0 %115
    %117 = vrot.lane.b32.xlu0 %v87, 127
    %v118 = vpop.permute.xlu0 %117
    %119 = vrot.lane.b32.xlu0 %v88, 127
    %v120 = vpop.permute.xlu0 %119
    %121 = vrot.lane.b32.xlu0 %v73, 1
    %v122 = vpop.permute.xlu0 %121
    %123 = vrot.lane.b32.xlu0 %v74, 1
    %v124 = vpop.permute.xlu0 %123
    %125 = vrot.lane.b32.xlu0 %v75, 1
    %v126 = vpop.permute.xlu0 %125
    %127 = vrot.lane.b32.xlu0 %v76, 1
    %v128 = vpop.permute.xlu0 %127
    %129 = vrot.lane.b32.xlu0 %v77, 1
    %v130 = vpop.permute.xlu0 %129
    %131 = vrot.lane.b32.xlu0 %v78, 1
    %v132 = vpop.permute.xlu0 %131
    %133 = vrot.lane.b32.xlu0 %v79, 1
    %v134 = vpop.permute.xlu0 %133
    %135 = vrot.lane.b32.xlu0 %v80, 1
    %v136 = vpop.permute.xlu0 %135
    %137 = vrot.lane.b32.xlu0 %v81, 1
    %v138 = vpop.permute.xlu0 %137
    %139 = vrot.lane.b32.xlu0 %v82, 1
    %v140 = vpop.permute.xlu0 %139
    %141 = vrot.lane.b32.xlu0 %v83, 1
    %v142 = vpop.permute.xlu0 %141
    %143 = vrot.lane.b32.xlu0 %v84, 1
    %v144 = vpop.permute.xlu0 %143
    %145 = vrot.lane.b32.xlu0 %v85, 1
    %v146 = vpop.permute.xlu0 %145
    %147 = vrot.lane.b32.xlu0 %v86, 1
    %v148 = vpop.permute.xlu0 %147
    %149 = vrot.lane.b32.xlu0 %v87, 1
    %v150 = vpop.permute.xlu0 %149
    %151 = vrot.lane.b32.xlu0 %v88, 1
    %v152 = vpop.permute.xlu0 %151
    %v153 = vld [vmem:[#allocation2] sm:$0xff]
    %v154 = vld [vmem:[#allocation2 + $0x8] sm:$0xff]
    %v155 = vld [vmem:[#allocation2 + $0x10] sm:$0xff]
    %v156 = vld [vmem:[#allocation2 + $0x18] sm:$0xff]
    %v157 = vld [vmem:[#allocation2 + $0x20] sm:$0xff]
    %v158 = vld [vmem:[#allocation2 + $0x28] sm:$0xff]
    %v159 = vld [vmem:[#allocation2 + $0x30] sm:$0xff]
    %v160 = vld [vmem:[#allocation2 + $0x38] sm:$0xff]
    %v161 = vmul.f32 %v153, %v73
    %v162 = vmul.f32 %v154, %v74
    %v163 = vmul.f32 %v155, %v75
    %v164 = vmul.f32 %v156, %v76
    %v165 = vmul.f32 %v157, %v77
    %v166 = vmul.f32 %v158, %v78
    %v167 = vmul.f32 %v159, %v79
    %v168 = vmul.f32 %v160, %v80
    %v169 = vmul.f32 %v153, %v81
    %v170 = vmul.f32 %v154, %v82
    %v171 = vmul.f32 %v155, %v83
    %v172 = vmul.f32 %v156, %v84
    %v173 = vmul.f32 %v157, %v85
    %v174 = vmul.f32 %v158, %v86
    %v175 = vmul.f32 %v159, %v87
    %v176 = vmul.f32 %v160, %v88
    %v177 = vld [vmem:[#allocation5] sm:$0xff]
    %v178 = vld [vmem:[#allocation5 + $0x8] sm:$0xff]
    %v179 = vld [vmem:[#allocation5 + $0x10] sm:$0xff]
    %v180 = vld [vmem:[#allocation5 + $0x18] sm:$0xff]
    %v181 = vld [vmem:[#allocation5 + $0x20] sm:$0xff]
    %v182 = vld [vmem:[#allocation5 + $0x28] sm:$0xff]
    %v183 = vld [vmem:[#allocation5 + $0x30] sm:$0xff]
    %v184 = vld [vmem:[#allocation5 + $0x38] sm:$0xff]
    %v185 = vmul.f32 %v177, %v90
    %v186 = vmul.f32 %v178, %v92
    %v187 = vmul.f32 %v179, %v94
    %v188 = vmul.f32 %v180, %v96
    %v189 = vmul.f32 %v181, %v98
    %v190 = vmul.f32 %v182, %v100
    %v191 = vmul.f32 %v183, %v102
    %v192 = vmul.f32 %v184, %v104
    %v193 = vmul.f32 %v177, %v106
    %v194 = vmul.f32 %v178, %v108
    %v195 = vmul.f32 %v179, %v110
    %v196 = vmul.f32 %v180, %v112
    %v197 = vmul.f32 %v181, %v114
    %v198 = vmul.f32 %v182, %v116
    %v199 = vmul.f32 %v183, %v118
    %v200 = vmul.f32 %v184, %v120
    %v201 = vadd.f32 %v161, %v185
    %v202 = vadd.f32 %v162, %v186
    %v203 = vadd.f32 %v163, %v187
    %v204 = vadd.f32 %v164, %v188
    %v205 = vadd.f32 %v165, %v189
    %v206 = vadd.f32 %v166, %v190
    %v207 = vadd.f32 %v167, %v191
    %v208 = vadd.f32 %v168, %v192
    %v209 = vadd.f32 %v169, %v193
    %v210 = vadd.f32 %v170, %v194
    %v211 = vadd.f32 %v171, %v195
    %v212 = vadd.f32 %v172, %v196
    %v213 = vadd.f32 %v173, %v197
    %v214 = vadd.f32 %v174, %v198
    %v215 = vadd.f32 %v175, %v199
    %v216 = vadd.f32 %v176, %v200
    %v217 = vld [vmem:[#allocation7] sm:$0xff]
    %v218 = vld [vmem:[#allocation7 + $0x8] sm:$0xff]
    %v219 = vld [vmem:[#allocation7 + $0x10] sm:$0xff]
    %v220 = vld [vmem:[#allocation7 + $0x18] sm:$0xff]
    %v221 = vld [vmem:[#allocation7 + $0x20] sm:$0xff]
    %v222 = vld [vmem:[#allocation7 + $0x28] sm:$0xff]
    %v223 = vld [vmem:[#allocation7 + $0x30] sm:$0xff]
    %v224 = vld [vmem:[#allocation7 + $0x38] sm:$0xff]
    %v225 = vmul.f32 %v217, %v122
    %v226 = vmul.f32 %v218, %v124
    %v227 = vmul.f32 %v219, %v126
    %v228 = vmul.f32 %v220, %v128
    %v229 = vmul.f32 %v221, %v130
    %v230 = vmul.f32 %v222, %v132
    %v231 = vmul.f32 %v223, %v134
    %v232 = vmul.f32 %v224, %v136
    %v233 = vmul.f32 %v217, %v138
    %v234 = vmul.f32 %v218, %v140
    %v235 = vmul.f32 %v219, %v142
    %v236 = vmul.f32 %v220, %v144
    %v237 = vmul.f32 %v221, %v146
    %v238 = vmul.f32 %v222, %v148
    %v239 = vmul.f32 %v223, %v150
    %v240 = vmul.f32 %v224, %v152
    %v241 = vadd.f32 %v201, %v225
    %v242 = vadd.f32 %v202, %v226
    %v243 = vadd.f32 %v203, %v227
    %v244 = vadd.f32 %v204, %v228
    %v245 = vadd.f32 %v205, %v229
    %v246 = vadd.f32 %v206, %v230
    %v247 = vadd.f32 %v207, %v231
    %v248 = vadd.f32 %v208, %v232
    %v249 = vadd.f32 %v209, %v233
    %v250 = vadd.f32 %v210, %v234
    %v251 = vadd.f32 %v211, %v235
    %v252 = vadd.f32 %v212, %v236
    %v253 = vadd.f32 %v213, %v237
    %v254 = vadd.f32 %v214, %v238
    %v255 = vadd.f32 %v215, %v239
    %v256 = vadd.f32 %v216, %v240
    %257 = vst [vmem:[#allocation10] sm:$0xff] %v241
    %258 = vst [vmem:[#allocation10 + $0x8] sm:$0xff] %v242
    %259 = vst [vmem:[#allocation10 + $0x10] sm:$0xff] %v243
    %260 = vst [vmem:[#allocation10 + $0x18] sm:$0xff] %v244
    %261 = vst [vmem:[#allocation10 + $0x20] sm:$0xff] %v245
    %262 = vst [vmem:[#allocation10 + $0x28] sm:$0xff] %v246
    %263 = vst [vmem:[#allocation10 + $0x30] sm:$0xff] %v247
    %264 = vst [vmem:[#allocation10 + $0x38] sm:$0xff] %v248
    %265 = vst [vmem:[#allocation10 + $0x40] sm:$0xff] %v249
    %266 = vst [vmem:[#allocation10 + $0x48] sm:$0xff] %v250
    %267 = vst [vmem:[#allocation10 + $0x50] sm:$0xff] %v251
    %268 = vst [vmem:[#allocation10 + $0x58] sm:$0xff] %v252
    %269 = vst [vmem:[#allocation10 + $0x60] sm:$0xff] %v253
    %270 = vst [vmem:[#allocation10 + $0x68] sm:$0xff] %v254
    %271 = vst [vmem:[#allocation10 + $0x70] sm:$0xff] %v255
    %272 = vst [vmem:[#allocation10 + $0x78] sm:$0xff] %v256
    // Predicated region
    $region34: #{tpu_custom_call.1} parent=1 // pred_check
      _
    $region35: #{tpu_custom_call.1} parent=1 // pred_check_branch
      %274 = sbr.rel (0) target = $region37
    $region36: #{tpu_custom_call.1} parent=1 // pred_region
      %s276 = ssub.s32 2048, 2048
      %277 = vsyncadd [#allocation4], %s276
      %s278 = sshll.u32 [#allocation10], 4
      %s279 = int_to_ptr.vmem [resolvable:$true] %s278
      %284 = dma.vmem_to_hbm [thread:$0]  %s279, 2048, %s4, [#allocation4], 128, 128, 8
    $region37: #{tpu_custom_call.1} parent=1 // pred_fallthru
      _
    // Predicated region
    $region38: #{tpu_custom_call.1} parent=1 // pred_check
      _
    $region39: #{tpu_custom_call.1} parent=1 // pred_check_branch
      %286 = sbr.rel (0) target = $region41
    $region40: #{tpu_custom_call.1} parent=1 // pred_region
      %287 = dma.done [#allocation4], 2048
    $region41: #{tpu_custom_call.1} parent=1 // pred_fallthru
      _
    %288 = vsyncpa [#allocation3], 1
    %289 = vsyncpa [#allocation6], 1
    %290 = vsyncpa [#allocation9], 1
    %291 = vsyncpa [#allocation4], 1

</llo_original>
